<compile_context>
chip_gen: v7x
topology: tpu7x:2x2x1
jax: 0.10.0
libtpu: 0.0.40
codegen_flags: <defaults>
</compile_context>

<pallas_src>
import jax
import jax.numpy as jnp
from jax.experimental import pallas as pl
from jax.experimental.pallas import tpu as pltpu


MiB = 1024 * 1024


# ------------------------------ helpers --------------------------------------


def _round_up(x, m):
    return ((x + m - 1) // m) * m


def _pick_tile(dim, target, align):
    """Largest divisor of `dim` that is <= target and a multiple of `align`;
    falls back to the full extent (a full-extent block is always legal)."""
    best = dim
    c = align
    while c <= min(dim, target):
        if dim % c == 0:
            best = c
        c += align
    return best


def _vmem_limit(buffer_bytes):
    # Generous headroom over the computed pipeline-buffer footprint, floored at
    # the v6e/v7x scoped default (32 MiB) and capped well below physical VMEM.
    return int(min(100 * MiB, max(32 * MiB, buffer_bytes + 32 * MiB)))


# ------------------------------ Pallas kernels -------------------------------


def _router_scores_kernel(x_ref, w_ref, o_ref):
    # scores = sigmoid(x @ W_router^T); bf16 MXU inputs, f32 accumulation,
    # sigmoid in f32 (matches the plain-jnp reference bit-for-bit in practice).
    logits = jnp.dot(x_ref[...], w_ref[...], preferred_element_type=jnp.float32)
    o_ref[...] = jax.nn.sigmoid(logits)


def _moe_grouped_kernel(tile_expert_ref, n_used_ref,          # scalar prefetch
                        x_ref, gu_ref, dw_ref, tw_ref,
                        o_ref, acc_ref):
    """Grid: (row tile t [parallel], I-chunk ic [arbitrary / reduction]).

    Each row tile belongs to exactly one expert (groups are padded to a
    multiple of tm).  acc_ref (f32 VMEM scratch) is resident across the
    I-chunk reduction; the bf16 output block is written once at the last
    chunk.  Phantom trailing tiles (t >= n_used) are skipped entirely.
    """
    ic = pl.program_id(1)
    t_i = dw_ref.shape[0]

    @pl.when(pl.program_id(0) < n_used_ref[0])
    def _():
        @pl.when(ic == 0)
        def _():
            acc_ref[...] = jnp.zeros_like(acc_ref)

        x = x_ref[...]                                                # (tm, H) bf16
        # fused gate|up matmul: one contiguous (H, 2*t_i) weight tile
        gu = jnp.dot(x, gu_ref[...], preferred_element_type=jnp.float32)
        g = gu[:, :t_i]
        u = gu[:, t_i:]
        h = (g * jax.nn.sigmoid(g)) * u                               # f32 SiLU(g)*u
        # per-row routing weight applied before the down matmul (pad rows = 0)
        hw = (h * tw_ref[...]).astype(jnp.bfloat16)                   # (tm, t_i)
        acc_ref[...] += jnp.dot(hw, dw_ref[...],
                                preferred_element_type=jnp.float32)   # (tm, H)

        @pl.when(ic == pl.num_programs(1) - 1)
        def _():
            o_ref[...] = acc_ref[...].astype(o_ref.dtype)


# ------------------------------ wrappers --------------------------------------


def router_scores(x_bf16, w_router_t, *, tm):
    T, H = x_bf16.shape
    E = w_router_t.shape[1]
    assert T % tm == 0
    buf = 2 * (tm * H * 2 + H * E * 2 + tm * E * 4)
    return pl.pallas_call(
        _router_scores_kernel,
        out_shape=jax.ShapeDtypeStruct((T, E), jnp.float32),
        grid=(T // tm,),
        in_specs=[pl.BlockSpec((tm, H), lambda t: (t, 0)),
                  pl.BlockSpec((H, E), lambda t: (0, 0))],
        out_specs=pl.BlockSpec((tm, E), lambda t: (t, 0)),
        compiler_params=pltpu.CompilerParams(
            dimension_semantics=("parallel",),
            vmem_limit_bytes=_vmem_limit(buf)),
    )(x_bf16, w_router_t)


def moe_grouped_experts(x_pad, gu_w_all, dw_all, w_pad, tile_expert, n_used,
                        *, tm, t_i):
    """x_pad: (M_pad, H) bf16, rows sorted/padded by expert group;
    gu_w_all: (E_total, n_i, H, 2*t_i) bf16 pre-chunked fused gate|up;
    dw_all:   (E_total, I, H) bf16 down-proj;
    w_pad:    (M_pad, 1) f32 per-row routing weight (0 on padding rows);
    tile_expert: (n_tiles,) int32 scalar-prefetch tile -> expert map;
    n_used: (1,) int32 number of real (non-phantom) row tiles."""
    M_pad, H = x_pad.shape
    E_total, n_i, _, two_ti = gu_w_all.shape
    assert two_ti == 2 * t_i and M_pad % tm == 0
    n_tiles = M_pad // tm

    buf = (2 * tm * H * 2 +            # x block (bf16, double buffered)
           2 * H * 2 * t_i * 2 +       # fused gate|up weight block
           2 * t_i * H * 2 +           # down-proj weight block
           2 * tm * 1 * 4 +            # per-row routing weights
           2 * tm * H * 2 +            # bf16 output block
           tm * H * 4)                 # f32 accumulator scratch

    grid_spec = pltpu.PrefetchScalarGridSpec(
        num_scalar_prefetch=2,
        grid=(n_tiles, n_i),
        in_specs=[
            pl.BlockSpec((tm, H), lambda t, i, te, nu: (t, 0)),
            pl.BlockSpec((None, None, H, 2 * t_i),
                         lambda t, i, te, nu: (te[t], i, 0, 0)),
            pl.BlockSpec((None, t_i, H),
                         lambda t, i, te, nu: (te[t], i, 0)),
            pl.BlockSpec((tm, 1), lambda t, i, te, nu: (t, 0)),
        ],
        out_specs=pl.BlockSpec((tm, H), lambda t, i, te, nu: (t, 0)),
        scratch_shapes=[pltpu.VMEM((tm, H), jnp.float32)],
    )
    return pl.pallas_call(
        _moe_grouped_kernel,
        grid_spec=grid_spec,
        out_shape=jax.ShapeDtypeStruct((M_pad, H), jnp.bfloat16),
        compiler_params=pltpu.CompilerParams(
            # Row-tile axis == group axis (tiles are per-expert contiguous):
            # "parallel" lets v7x's 2 TensorCores split the expert weight
            # stream.  The I-chunk axis is the reduction -> "arbitrary".
            dimension_semantics=("parallel", "arbitrary"),
            vmem_limit_bytes=_vmem_limit(buf)),
    )(tile_expert, n_used, x_pad, gu_w_all, dw_all, w_pad)


# ---------------------- routing (plain JAX glue, tiny) ------------------------
# TODO(synk): grouped top-k selection and the sort/gather/scatter metadata are
# tiny data-dependent control flow; kept in plain JAX / XLA.


def get_topk(scores, bias, *, n_group, topk_group, top_k, norm_topk_prob,
             routed_scaling_factor):
    T, E = scores.shape
    scores_for_choice = scores + bias[None, :]
    group_scores = jax.lax.top_k(
        scores_for_choice.reshape(T, n_group, E // n_group), 2)[0].sum(-1)
    group_idx = jax.lax.top_k(group_scores, topk_group)[1]
    group_mask = jnp.zeros_like(group_scores).at[
        jnp.arange(T)[:, None], group_idx].set(1.0)
    score_mask = jnp.repeat(group_mask, E // n_group, axis=-1)
    masked_scores = jnp.where(score_mask.astype(bool), scores_for_choice, 0.0)
    topk_indices = jax.lax.top_k(masked_scores, top_k)[1]
    topk_weights = jnp.take_along_axis(scores, topk_indices, axis=1)
    if norm_topk_prob:
        topk_weights = topk_weights / (topk_weights.sum(-1, keepdims=True) + 1e-20)
    topk_weights = topk_weights * routed_scaling_factor
    return topk_indices, topk_weights


# ---------------------------- param preparation -------------------------------


def prepare_params(raw, cfg, *, t_i):
    """torch-layout f32 params -> kernel-ready bf16 stacks.

    * Shared MLP (intermediate S*I) is split along the intermediate dim into S
      chunks of width I and appended as extra experts (exact).
    * Gate and up projections are fused and pre-chunked to
      (E_total, I//t_i, H, 2*t_i) so each kernel weight tile is one contiguous
      HBM region holding [gate_chunk | up_chunk]."""
    E = cfg["n_routed_experts"]
    S = cfg["n_shared_experts"]
    I = cfg["moe_intermediate_size"]
    H = cfg["hidden_size"]
    assert I % t_i == 0
    n_i = I // t_i
    E_total = E + S

    gate_r = jnp.transpose(raw["gate_w"], (0, 2, 1))                      # (E,H,I)
    up_r = jnp.transpose(raw["up_w"], (0, 2, 1))
    down_r = jnp.transpose(raw["down_w"], (0, 2, 1))                      # (E,I,H)

    sh_gate = jnp.transpose(raw["sh_gate_w"].reshape(S, I, H), (0, 2, 1))  # (S,H,I)
    sh_up = jnp.transpose(raw["sh_up_w"].reshape(S, I, H), (0, 2, 1))
    sh_down = jnp.transpose(raw["sh_down_w"], (1, 0)).reshape(S, I, H)     # (S,I,H)

    gate_all = jnp.concatenate([gate_r, sh_gate], 0)                       # (E_t,H,I)
    up_all = jnp.concatenate([up_r, sh_up], 0)
    down_all = jnp.concatenate([down_r, sh_down], 0)                       # (E_t,I,H)

    g_ch = gate_all.reshape(E_total, H, n_i, t_i).transpose(0, 2, 1, 3)    # (E_t,n_i,H,t_i)
    u_ch = up_all.reshape(E_total, H, n_i, t_i).transpose(0, 2, 1, 3)
    gu = jnp.concatenate([g_ch, u_ch], axis=-1)                            # (E_t,n_i,H,2t_i)

    return dict(
        t_i=t_i,
        router_w_t=jnp.transpose(raw["router_w"]).astype(jnp.bfloat16),    # (H, E)
        e_score_correction_bias=raw["e_score_correction_bias"].astype(jnp.float32),
        gu_w_all=gu.astype(jnp.bfloat16),
        down_w_all=down_all.astype(jnp.bfloat16),
    )


# ------------------------------ full module -----------------------------------


def deepseek_v3_moe_forward(hidden_states, params, cfg, *, tm=256, tm_router=None):
    """tm: row-tile (MXU-aligned; 256 v7x/v5e, 512 v6e).  t_i is fixed at
    prepare_params time (256 v7x, 512 v6e/v5e)."""
    orig_shape = hidden_states.shape
    H = orig_shape[-1]
    x = hidden_states.reshape(-1, H)
    T = x.shape[0]
    x_bf16 = x.astype(jnp.bfloat16)

    E = cfg["n_routed_experts"]
    S = cfg["n_shared_experts"]
    K = cfg["num_experts_per_tok"]
    E_total = E + S
    t_i = params["t_i"]

    # 1) router (Pallas) + grouped top-k (plain JAX)
    tm_router = tm_router or _pick_tile(T, 256, 8)
    scores = router_scores(x_bf16, params["router_w_t"], tm=tm_router)     # (T, E)
    topk_indices, topk_weights = get_topk(
        scores, params["e_score_correction_bias"],
        n_group=cfg["n_group"], topk_group=cfg["topk_group"],
        top_k=K, norm_topk_prob=cfg["norm_topk_prob"],
        routed_scaling_factor=cfg["routed_scaling_factor"])

    # 2) grouped (sorted-by-expert) packing with per-group padding to tm.
    #    Shared expert chunks are appended as experts E..E_total-1, weight 1.
    n_exp = T * (K + S)
    expert_ids = jnp.concatenate(
        [topk_indices.reshape(-1),
         jnp.repeat(jnp.arange(E, E_total), T)]).astype(jnp.int32)
    token_ids = jnp.concatenate(
        [jnp.repeat(jnp.arange(T), K), jnp.tile(jnp.arange(T), S)]).astype(jnp.int32)
    row_weights = jnp.concatenate(
        [topk_weights.reshape(-1), jnp.ones((S * T,), jnp.float32)])

    order = jnp.argsort(expert_ids)
    sorted_expert = expert_ids[order]
    sorted_token = token_ids[order]
    sorted_weight = row_weights[order]

    counts = jnp.bincount(expert_ids, length=E_total)                      # (E_total,)
    group_start = jnp.cumsum(counts) - counts
    rank = jnp.arange(n_exp, dtype=jnp.int32) - group_start[sorted_expert]

    padded_counts = ((counts + tm - 1) // tm) * tm
    padded_end = jnp.cumsum(padded_counts)
    padded_start = padded_end - padded_counts
    dest = (padded_start[sorted_expert] + rank).astype(jnp.int32)          # padded rows

    M_pad = _round_up(n_exp + E_total * (tm - 1), tm)                      # static bound
    n_tiles = M_pad // tm

    token_pad = jnp.zeros((M_pad,), jnp.int32).at[dest].set(sorted_token)
    weight_pad = jnp.zeros((M_pad,), jnp.float32).at[dest].set(sorted_weight)

    tile_start = jnp.arange(n_tiles, dtype=jnp.int32) * tm
    tile_expert = jnp.minimum(
        jnp.searchsorted(padded_end, tile_start, side="right"),
        E_total - 1).astype(jnp.int32)
    n_used = (padded_end[-1] // tm).astype(jnp.int32).reshape(1)

    x_pad = x_bf16[token_pad]                                              # (M_pad, H)

    # 3) grouped routed + shared expert Pallas kernel (bf16 MXU, f32 acc)
    out_pad = moe_grouped_experts(
        x_pad, params["gu_w_all"], params["down_w_all"],
        weight_pad[:, None], tile_expert, n_used, tm=tm, t_i=t_i)          # (M_pad, H) bf16

    # 4) gather back to token order and combine (f32 accumulation)
    dest_orig = jnp.zeros((n_exp,), jnp.int32).at[order].set(dest)
    out_rows = out_pad[dest_orig].astype(jnp.float32)                      # (n_exp, H)
    routed = out_rows[:T * K].reshape(T, K, H).sum(axis=1)
    shared = out_rows[T * K:].reshape(S, T, H).sum(axis=0)
    out = routed + shared
    return out.reshape(orig_shape).astype(hidden_states.dtype)


# ------------------------------ reference (jnp) --------------------------------


def _bf16_dot(a, b):
    return jnp.dot(a.astype(jnp.bfloat16), b.astype(jnp.bfloat16),
                   preferred_element_type=jnp.float32)


def deepseek_v3_moe_reference(hidden_states, raw, cfg):
    """Plain-jnp reference using the same dtype policy (bf16 matmul inputs,
    f32 accumulation) with un-fused, un-split, un-grouped weights."""
    orig_shape = hidden_states.shape
    H = orig_shape[-1]
    x = hidden_states.reshape(-1, H).astype(jnp.float32)
    T = x.shape[0]
    E = cfg["n_routed_experts"]

    scores = jax.nn.sigmoid(_bf16_dot(x, jnp.transpose(raw["router_w"])))
    topk_indices, topk_weights = get_topk(
        scores, raw["e_score_correction_bias"],
        n_group=cfg["n_group"], topk_group=cfg["topk_group"],
        top_k=cfg["num_experts_per_tok"],
        norm_topk_prob=cfg["norm_topk_prob"],
        routed_scaling_factor=cfg["routed_scaling_factor"])
    tok_w = jnp.zeros((T, E), jnp.float32).at[
        jnp.arange(T)[:, None], topk_indices].add(topk_weights)

    def mlp(xv, gw_t, uw_t, dw_t, w=None):
        g = _bf16_dot(xv, gw_t)
        u = _bf16_dot(xv, uw_t)
        h = (g * jax.nn.sigmoid(g)) * u
        if w is not None:
            h = h * w
        return _bf16_dot(h, dw_t)

    moe_out = jnp.zeros_like(x)
    for e in range(E):
        moe_out = moe_out + mlp(x, raw["gate_w"][e].T, raw["up_w"][e].T,
                                raw["down_w"][e].T, tok_w[:, e:e + 1])
    out = moe_out + mlp(x, raw["sh_gate_w"].T, raw["sh_up_w"].T,
                        raw["sh_down_w"].T)
    return out.reshape(orig_shape)


# ------------------------------ main -------------------------------------------


if __name__ == "__main__":
    cfg = dict(
        hidden_size=64,
        moe_intermediate_size=256,
        n_routed_experts=8,
        num_experts_per_tok=2,
        n_group=4,
        topk_group=2,
        norm_topk_prob=True,
        routed_scaling_factor=2.5,
        n_shared_experts=2,
    )
    H = cfg["hidden_size"]
    I = cfg["moe_intermediate_size"]
    E = cfg["n_routed_experts"]
    I_sh = I * cfg["n_shared_experts"]

    batch, seq = 2, 16

    key = jax.random.PRNGKey(0)
    keys = jax.random.split(key, 8)
    scale = 0.02

    raw = {
        "router_w": scale * jax.random.normal(keys[0], (E, H), jnp.float32),
        "e_score_correction_bias": jnp.zeros((E,), jnp.float32),
        "gate_w": scale * jax.random.normal(keys[1], (E, I, H), jnp.float32),
        "up_w": scale * jax.random.normal(keys[2], (E, I, H), jnp.float32),
        "down_w": scale * jax.random.normal(keys[3], (E, H, I), jnp.float32),
        "sh_gate_w": scale * jax.random.normal(keys[4], (I_sh, H), jnp.float32),
        "sh_up_w": scale * jax.random.normal(keys[5], (I_sh, H), jnp.float32),
        "sh_down_w": scale * jax.random.normal(keys[6], (H, I_sh), jnp.float32),
    }
    # Small tiles so multiple row tiles, I-chunks, experts-per-tile and the
    # phantom-tile skip path are all exercised (I=256 -> 2 I-chunks; tm=16 ->
    # ~12 used row tiles out of 18).
    params = prepare_params(raw, cfg, t_i=128)

    hidden_states = jax.random.normal(keys[7], (batch, seq, H), jnp.float32)

    out = deepseek_v3_moe_forward(hidden_states, params, cfg, tm=16)
    out = jax.block_until_ready(out)

    ref = jax.block_until_ready(deepseek_v3_moe_reference(hidden_states, raw, cfg))
    assert out.shape == hidden_states.shape
    assert jnp.allclose(out, ref, atol=2e-3, rtol=2e-2), "mismatch vs reference"

    print("KERNEL_OK")
</pallas_src>

<mosaic_0001>
module attributes {stable_mosaic.version = 11 : i64} {
  func.func @_router_scores_kernel(%arg0: i32, %arg1: memref<32x64xbf16, #tpu.memory_space<vmem>>, %arg2: memref<64x8xbf16, #tpu.memory_space<vmem>>, %arg3: memref<32x8xf32, #tpu.memory_space<vmem>>) attributes {dimension_semantics = [#tpu.dimension_semantics<parallel>], iteration_bounds = array<i64: 1>, scalar_prefetch = 0 : i64, scratch_operands = 0 : i64, tpu.core_type = #tpu.core_type<tc>, window_params = [{transform_indices = @transform_0, window_bounds = array<i64: 32, 64>}, {pipeline_mode = #tpu.pipeline_mode<synchronous>, transform_indices = @transform_1, window_bounds = array<i64: 64, 8>}, {transform_indices = @transform_2, window_bounds = array<i64: 32, 8>}]} {
    %c0 = arith.constant 0 : index
    %c0_0 = arith.constant 0 : index
    %0 = vector.load %arg1[%c0, %c0_0] : memref<32x64xbf16, #tpu.memory_space<vmem>>, vector<32x64xbf16>
    %c0_1 = arith.constant 0 : index
    %c0_2 = arith.constant 0 : index
    %1 = vector.load %arg2[%c0_1, %c0_2] : memref<64x8xbf16, #tpu.memory_space<vmem>>, vector<64x8xbf16>
    %cst = arith.constant dense<0.000000e+00> : vector<32x8xf32>
    %2 = tpu.matmul %0, %1, %cst {dimension_numbers = #tpu.dot_dimension_numbers<[1], [0], [0], [1], [0, 0, 1, 1], [], []>} : vector<32x64xbf16>, vector<64x8xbf16>, vector<32x8xf32> -> vector<32x8xf32>
    %3 = arith.negf %2 : vector<32x8xf32>
    %4 = math.exp %3 : vector<32x8xf32>
    %cst_3 = arith.constant 1.000000e+00 : f32
    %5 = vector.broadcast %cst_3 : f32 to vector<32x8xf32>
    %6 = arith.addf %5, %4 : vector<32x8xf32>
    %7 = arith.divf %5, %6 : vector<32x8xf32>
    %c0_4 = arith.constant 0 : index
    %c0_5 = arith.constant 0 : index
    %8 = vector.load %arg3[%c0_4, %c0_5] : memref<32x8xf32, #tpu.memory_space<vmem>>, vector<32x8xf32>
    tpu.vector_store %arg3[%c0_4, %c0_5], %7 {strides = array<i32>} : memref<32x8xf32, #tpu.memory_space<vmem>>, vector<32x8xf32>,
    return
  }
  func.func @transform_0(%arg0: i32) -> (i32, i32) {
    %c0_i32 = arith.constant 0 : i32
    %c0_i32_0 = arith.constant 0 : i32
    return %arg0, %c0_i32 : i32, i32
  }
  func.func @transform_1(%arg0: i32) -> (i32, i32) {
    %c0_i32 = arith.constant 0 : i32
    %c0_i32_0 = arith.constant 0 : i32
    %c0_i32_1 = arith.constant 0 : i32
    return %c0_i32, %c0_i32_0 : i32, i32
  }
  func.func @transform_2(%arg0: i32) -> (i32, i32) {
    %c0_i32 = arith.constant 0 : i32
    %c0_i32_0 = arith.constant 0 : i32
    return %arg0, %c0_i32 : i32, i32
  }
}

</mosaic_0001>

<llo_original>
// kernel: tpu_custom_call.1
$region0: #{tpu_custom_call.1}
  #allocation0 [shape = 'u32[]', space=smem, size = 0x4, offset = 0x4, fixed_abs, tag = 'smem constant byte address 0x4 - core index']
  #allocation1 [shape = 'u32[144,128]{1,0:T(1,128)}', space=vmem, size = 0x12000, scoped, tag = 'internal scratch']
  %s0 = inlined_call_operand.vmem [shape: bf16[32,64], index: 0, kind: input, shape index: {}]
  %s1 = inlined_call_operand.vmem [shape: bf16[64,8], index: 1, kind: input, shape index: {}]
  %s2 = inlined_call_operand.vmem [shape: f32[32,8], index: 2, kind: output, shape index: {}]
  %s3 = sld [smem:[#allocation0]]
  $region18: #{tpu_custom_call.1} parent=0
    _
  %s5 = ssub.s32 1, %s3
  %s6 = scalar_select 0, %s5, %s3
  // Predicated region
  $region2: #{tpu_custom_call.1} parent=0 // pred_check
    _
  $region3: #{tpu_custom_call.1} parent=0 // pred_check_branch
    %8 = sbr.rel (0) target = $region5
  $region4: #{tpu_custom_call.1} parent=0 // pred_region
    _
  $region5: #{tpu_custom_call.1} parent=0 // pred_fallthru
    _
  // Predicated region
  $region6: #{tpu_custom_call.1} parent=0 // pred_check
    _
  $region7: #{tpu_custom_call.1} parent=0 // pred_check_branch
    %10 = sbr.rel (0) target = $region9
  $region8: #{tpu_custom_call.1} parent=0 // pred_region
    _
  $region9: #{tpu_custom_call.1} parent=0 // pred_fallthru
    _
  %v12 = vld [vmem:[%s0] sm:$0xf]
  %v13 = vld [vmem:[%s0 + $0x4] sm:$0xf]
  %v14 = vld [vmem:[%s0 + $0x8] sm:$0xf]
  %v15 = vld [vmem:[%s0 + $0xc] sm:$0xf]
  %v16 = vld [vmem:[%s1] sm:$0xf]
  %v17 = vld [vmem:[%s1 + $0x4] sm:$0xf]
  %v18 = vld [vmem:[%s1 + $0x8] sm:$0xf]
  %v19 = vld [vmem:[%s1 + $0xc] sm:$0xf]
  %v20 = vld [vmem:[%s1 + $0x10] sm:$0xf]
  %v21 = vld [vmem:[%s1 + $0x14] sm:$0xf]
  %v22 = vld [vmem:[%s1 + $0x18] sm:$0xf]
  %v23 = vld [vmem:[%s1 + $0x1c] sm:$0xf]
  %v28 = vunpack.c.l.b16 %v12
  %v29 = vunpack.c.l.b16 %v13
  %v30 = vunpack.c.l.b16 %v14
  %v31 = vunpack.c.l.b16 %v15
  %v32 = vpack.c.b16 %v29, %v28
  %v33 = vpack.c.b16 %v31, %v30
  %v42 = vunpack.c.l.b16 %v16
  %v43 = vunpack.c.l.b16 %v17
  %v44 = vunpack.c.l.b16 %v18
  %v45 = vunpack.c.l.b16 %v19
  %v46 = vunpack.c.l.b16 %v20
  %v47 = vunpack.c.l.b16 %v21
  %v48 = vunpack.c.l.b16 %v22
  %v49 = vunpack.c.l.b16 %v23
  %v50 = vpack.c.b16 %v43, %v42
  %v51 = vpack.c.b16 %v45, %v44
  %v52 = vpack.c.b16 %v47, %v46
  %v53 = vpack.c.b16 %v49, %v48
  %vm58 = vcmask 523264
  %v60 = vsel %vm58, %v32, 0
  %v63 = vsel %vm58, %v33, 0
  %65 = vmatprep.subr.bf16.mxu0 0
  %66 = vmatpush1.bf16.msra.mxu0 %v50
  %67 = vmatprep.subr.bf16.mxu0 0
  %68 = vmatpush1.bf16.msra.mxu0 %v51
  %69 = vmatprep.subr.bf16.mxu0 0
  %70 = vmatpush1.bf16.msra.mxu0 %v52
  %71 = vmatprep.subr.bf16.mxu0 0
  %72 = vmatpush1.bf16.msra.mxu0 %v53
  %73 = vmatprep.subr.bf16.mxu0 0
  %74 = vmatpush1.bf16.msra.mxu0 0
  %75 = vmatprep.subr.bf16.mxu0 0
  %76 = vmatpush1.bf16.msra.mxu0 0
  %77 = vmatprep.subr.bf16.mxu0 0
  %78 = vmatpush1.bf16.msra.mxu0 0
  %79 = vmatprep.subr.bf16.mxu0 0
  %80 = vmatpush1.bf16.msra.mxu0 0
  %81 = vmatprep.subr.bf16.mxu0 0
  %82 = vmatpush1.bf16.msra.mxu0 0
  %83 = vmatprep.subr.bf16.mxu0 0
  %84 = vmatpush1.bf16.msra.mxu0 0
  %85 = vmatprep.subr.bf16.mxu0 0
  %86 = vmatpush1.bf16.msra.mxu0 0
  %87 = vmatprep.subr.bf16.mxu0 0
  %88 = vmatpush1.bf16.msra.mxu0 0
  %89 = vmatprep.subr.bf16.mxu0 0
  %90 = vmatpush1.bf16.msra.mxu0 0
  %91 = vmatprep.subr.bf16.mxu0 0
  %92 = vmatpush1.bf16.msra.mxu0 0
  %93 = vmatprep.subr.bf16.mxu0 0
  %94 = vmatpush1.bf16.msra.mxu0 0
  %95 = vmatprep.subr.bf16.mxu0 0
  %96 = vmatpush1.bf16.msra.mxu0 0
  %97 = vmatprep.mubr.bf16.mxu0 0
  %98 = vmatmul.mubr.bf16.gmra.mrb[0].mxu0 %v60
  %v99 = vpop.f32.mrb[0].mxu0
  %v100 = vadd.f32 0.0, %v99
  %v101 = vpop.f32.mrb[0].mxu0
  %v102 = vpop.f32.mrb[0].mxu0
  %v103 = vadd.f32 0.0, %v102
  %v104 = vpop.f32.mrb[0].mxu0
  %105 = vmatprep.mubr.bf16.mxu0 0
  %106 = vmatmul.mubr.bf16.gmra.mrb[0].mxu0 %v63
  %v107 = vpop.f32.mrb[0].mxu0
  %v108 = vadd.f32 0.0, %v107
  %v109 = vpop.f32.mrb[0].mxu0
  %v110 = vpop.f32.mrb[0].mxu0
  %v111 = vadd.f32 0.0, %v110
  %v112 = vpop.f32.mrb[0].mxu0
  %113 = vdwg.mxu0
  %v114 = vxor.u32 %v100, 2147483648
  %v115 = vxor.u32 %v103, 2147483648
  %v116 = vxor.u32 %v108, 2147483648
  %v117 = vxor.u32 %v111, 2147483648
  %v118 = vmul.f32 %v114, 1.442695
  %v119 = vpow.pop %v118
  %v120 = vmul.f32 %v115, 1.442695
  %v121 = vpow.pop %v120
  %v122 = vmul.f32 %v116, 1.442695
  %v123 = vpow.pop %v122
  %v124 = vmul.f32 %v117, 1.442695
  %v125 = vpow.pop %v124
  %v126 = vadd.f32 %v119, 1.0
  %v127 = vadd.f32 %v121, 1.0
  %v128 = vadd.f32 %v123, 1.0
  %v129 = vadd.f32 %v125, 1.0
  %v130 = vrcp.pop %v126
  %v131 = vmul.f32 1.0, %v130
  %v132 = vrcp.pop %v127
  %v133 = vmul.f32 1.0, %v132
  %v134 = vrcp.pop %v128
  %v135 = vmul.f32 1.0, %v134
  %v136 = vrcp.pop %v129
  %v137 = vmul.f32 1.0, %v136
  %vm138 = vcmask 64512
  %139 = vst.msk [vmem:[%s2] sm:$0xff] %vm138, %v131
  %140 = vst.msk [vmem:[%s2 + $0x8] sm:$0xff] %vm138, %v133
  %141 = vst.msk [vmem:[%s2 + $0x10] sm:$0xff] %vm138, %v135
  %142 = vst.msk [vmem:[%s2 + $0x18] sm:$0xff] %vm138, %v137
  // Predicated region
  $region10: #{tpu_custom_call.1} parent=0 // pred_check
    _
  $region11: #{tpu_custom_call.1} parent=0 // pred_check_branch
    %144 = sbr.rel (0) target = $region13
  $region12: #{tpu_custom_call.1} parent=0 // pred_region
    _
  $region13: #{tpu_custom_call.1} parent=0 // pred_fallthru
    _
  // Predicated region
  $region14: #{tpu_custom_call.1} parent=0 // pred_check
    _
  $region15: #{tpu_custom_call.1} parent=0 // pred_check_branch
    %146 = sbr.rel (0) target = $region17
  $region16: #{tpu_custom_call.1} parent=0 // pred_region
    _
  $region17: #{tpu_custom_call.1} parent=0 // pred_fallthru
    _

</llo_original>
